<compile_context>
chip_gen: v5e
topology: v5e:2x2
jax: 0.10.0
libtpu: 0.0.40
codegen_flags: <defaults>
</compile_context>

<pallas_src>
import functools

import jax
import jax.numpy as jnp
from jax.experimental import pallas as pl
from jax.experimental.pallas import tpu as pltpu

BASIC_BLOCK_EXPANSION = 1            # BasicBlock.expansion in torchvision resnet
IN_FEATURES = 512 * BASIC_BLOCK_EXPANSION

_LANE = 128
_SUBLANE = 8
_TB_MAX = 1024                       # batch tile cap (per-step-overhead amortization)


def _round_up(x, m):
    return ((x + m - 1) // m) * m


def _linear_head_kernel(x_ref, w_ref, b_ref, o_ref):
    # x_ref: [TB, F], w_ref: [F, Kp] (MXU-native k-major), b_ref: [1, Kp], o_ref: [TB, Kp]
    acc = jnp.dot(x_ref[...], w_ref[...], preferred_element_type=jnp.float32)
    o_ref[...] = (acc + b_ref[...]).astype(o_ref.dtype)


def prepare_head_params(weight, bias):
    """One-time (parameter-load time) prep.

    weight: [K, F] (PyTorch nn.Linear layout), bias: [K]
    Returns (w_pad [F, Kp] transposed + lane-padded, b_pad [1, Kp], K).
    Kp is the MINIMUM lane-dense multiple of 128 (do not over-pad: HBM-bound op).
    """
    K, F = weight.shape
    Kp = _round_up(K, _LANE)
    w_pad = jnp.zeros((F, Kp), weight.dtype).at[:, :K].set(weight.T)
    b_pad = jnp.zeros((1, Kp), bias.dtype).at[0, :K].set(bias)
    return w_pad, b_pad, K


def _cost(B, F, Kp, x_dtype, w_dtype):
    xb = B * F * jnp.dtype(x_dtype).itemsize
    wb = Kp * F * jnp.dtype(w_dtype).itemsize
    bb = Kp * jnp.dtype(w_dtype).itemsize
    ob = B * Kp * jnp.dtype(x_dtype).itemsize
    return pl.CostEstimate(flops=2 * B * F * Kp, transcendentals=0,
                           bytes_accessed=xb + wb + bb + ob)


@functools.partial(
    jax.jit,
    static_argnames=("output_k", "kmeans_use_features", "return_padded"))
def triplets_net5g_head(x, w_pad, b_pad, output_k,
                        kmeans_use_features=False, return_padded=False):
    """Forward pass of TripletsNet5gHead.

    x:      [B, 512*expansion]           (f32 or bf16)
    w_pad:  [512*expansion, Kp]          (from prepare_head_params)
    b_pad:  [1, Kp]
    Returns [B, output_k] (or the lane-padded [B, Kp] if return_padded=True,
    letting the consumer fuse the narrowing slice instead of paying an extra
    HBM copy here).
    """
    if kmeans_use_features:
        return x                                   # compile-time passthrough branch

    B, F = x.shape
    Fw, Kp = w_pad.shape
    assert Fw == F, "weight feature dim mismatch"
    cost = _cost(B, F, Kp, x.dtype, w_pad.dtype)

    if B <= _TB_MAX:
        # Small / medium batch: whole problem fits comfortably in VMEM on every
        # generation; skip the grid entirely (no per-step pipeline bookkeeping).
        out = pl.pallas_call(
            _linear_head_kernel,
            out_shape=jax.ShapeDtypeStruct((B, Kp), x.dtype),
            in_specs=[
                pl.BlockSpec(memory_space=pltpu.MemorySpace.VMEM),
                pl.BlockSpec(memory_space=pltpu.MemorySpace.VMEM),
                pl.BlockSpec(memory_space=pltpu.MemorySpace.VMEM),
            ],
            out_specs=pl.BlockSpec(memory_space=pltpu.MemorySpace.VMEM),
            cost_estimate=cost,
        )(x, w_pad, b_pad)
    else:
        # Large batch: tile over B.  Tile chosen so the grid always has >= 2
        # steps (both v7x TensorCores get work via "parallel"), capped at 1024
        # rows to amortize per-step overhead while staying tiny vs VMEM.
        tb = min(_TB_MAX, max(256, _round_up(pl.cdiv(B, 2), _SUBLANE)))
        out = pl.pallas_call(
            _linear_head_kernel,
            out_shape=jax.ShapeDtypeStruct((B, Kp), x.dtype),
            grid_spec=pltpu.PrefetchScalarGridSpec(
                num_scalar_prefetch=0,
                grid=(pl.cdiv(B, tb),),
                in_specs=[
                    pl.BlockSpec((tb, F), lambda i: (i, 0)),
                    pl.BlockSpec((F, Kp), lambda i: (0, 0)),   # constant block -> no re-DMA
                    pl.BlockSpec((1, Kp), lambda i: (0, 0)),   # constant block -> no re-DMA
                ],
                out_specs=pl.BlockSpec((tb, Kp), lambda i: (i, 0)),
            ),
            compiler_params=pltpu.CompilerParams(
                dimension_semantics=("parallel",)),
            cost_estimate=cost,
        )(x, w_pad, b_pad)

    if return_padded:
        return out
    return out[:, :output_k]


if __name__ == "__main__":
    key = jax.random.PRNGKey(0)
    kx, kw, kb, kx2 = jax.random.split(key, 4)

    B = 8                # small batch (no-grid path)
    B2 = 2048            # large batch (batch-tiled path, grid = 2 -> both v7x TCs)
    F = IN_FEATURES      # 512 * BasicBlock.expansion
    OUTPUT_K = 10        # config.output_k

    x = jax.random.normal(kx, (B, F), dtype=jnp.float32)
    x_big = jax.random.normal(kx2, (B2, F), dtype=jnp.float32)

    # Deterministic init mimicking nn.Linear default: U(-1/sqrt(F), 1/sqrt(F))
    bound = 1.0 / jnp.sqrt(jnp.float32(F))
    weight = jax.random.uniform(kw, (OUTPUT_K, F), dtype=jnp.float32,
                                minval=-bound, maxval=bound)
    bias = jax.random.uniform(kb, (OUTPUT_K,), dtype=jnp.float32,
                              minval=-bound, maxval=bound)

    # One-time parameter prep (outside the per-call hot path).
    w_pad, b_pad, k_out = prepare_head_params(weight, bias)

    # Pallas kernel, small-batch (no-grid) path.
    y = triplets_net5g_head(x, w_pad, b_pad, k_out, kmeans_use_features=False)
    y = jax.block_until_ready(y)

    # Pallas kernel, batch-tiled path.
    y_big = triplets_net5g_head(x_big, w_pad, b_pad, k_out, kmeans_use_features=False)
    y_big = jax.block_until_ready(y_big)

    # Passthrough branch (kmeans_use_features=True) is pure identity.
    y_feat = triplets_net5g_head(x, w_pad, b_pad, k_out, kmeans_use_features=True)
    y_feat = jax.block_until_ready(y_feat)

    # bf16 input path (f32 accumulation inside the kernel).
    x_bf = x.astype(jnp.bfloat16)
    w_pad_bf, b_pad_bf, _ = prepare_head_params(weight.astype(jnp.bfloat16),
                                                bias.astype(jnp.bfloat16))
    y_bf = triplets_net5g_head(x_bf, w_pad_bf, b_pad_bf, k_out)
    y_bf = jax.block_until_ready(y_bf)

    # Correctness checks against plain-JAX reference of the PyTorch semantics.
    y_ref = x @ weight.T + bias
    y_big_ref = x_big @ weight.T + bias
    y_bf_ref = (x_bf.astype(jnp.float32) @ weight.astype(jnp.bfloat16).astype(jnp.float32).T
                + bias.astype(jnp.bfloat16).astype(jnp.float32))

    assert y.shape == (B, OUTPUT_K)
    assert y_big.shape == (B2, OUTPUT_K)
    assert y_bf.shape == (B, OUTPUT_K)
    assert jnp.allclose(y, y_ref, atol=1e-5, rtol=1e-5)
    assert jnp.allclose(y_big, y_big_ref, atol=1e-5, rtol=1e-5)
    assert jnp.allclose(y_bf.astype(jnp.float32), y_bf_ref, atol=2e-2, rtol=2e-2)
    assert jnp.array_equal(y_feat, x)

    print("KERNEL_OK")
</pallas_src>

<mosaic_0001>
module attributes {stable_mosaic.version = 11 : i64} {
  func.func @_linear_head_kernel(%arg0: memref<8x512xf32, #tpu.memory_space<vmem>>, %arg1: memref<512x128xf32, #tpu.memory_space<vmem>>, %arg2: memref<1x128xf32, #tpu.memory_space<vmem>>, %arg3: memref<8x128xf32, #tpu.memory_space<vmem>>) attributes {dimension_semantics = [], scalar_prefetch = 0 : i64, scratch_operands = 0 : i64, tpu.core_type = #tpu.core_type<tc>} {
    %c0 = arith.constant 0 : index
    %c0_0 = arith.constant 0 : index
    %0 = vector.load %arg0[%c0, %c0_0] : memref<8x512xf32, #tpu.memory_space<vmem>>, vector<8x512xf32>
    %c0_1 = arith.constant 0 : index
    %c0_2 = arith.constant 0 : index
    %1 = vector.load %arg1[%c0_1, %c0_2] : memref<512x128xf32, #tpu.memory_space<vmem>>, vector<512x128xf32>
    %cst = arith.constant dense<0.000000e+00> : vector<8x128xf32>
    %2 = tpu.matmul %0, %1, %cst {dimension_numbers = #tpu.dot_dimension_numbers<[1], [0], [0], [1], [0, 0, 1, 1], [], []>} : vector<8x512xf32>, vector<512x128xf32>, vector<8x128xf32> -> vector<8x128xf32>
    %c0_3 = arith.constant 0 : index
    %c0_4 = arith.constant 0 : index
    %3 = vector.load %arg2[%c0_3, %c0_4] : memref<1x128xf32, #tpu.memory_space<vmem>>, vector<1x128xf32>
    %4 = vector.broadcast %3 : vector<1x128xf32> to vector<8x128xf32>
    %5 = arith.addf %2, %4 : vector<8x128xf32>
    %c0_5 = arith.constant 0 : index
    %c0_6 = arith.constant 0 : index
    %6 = vector.load %arg3[%c0_5, %c0_6] : memref<8x128xf32, #tpu.memory_space<vmem>>, vector<8x128xf32>
    tpu.vector_store %arg3[%c0_5, %c0_6], %5 {strides = array<i32>} : memref<8x128xf32, #tpu.memory_space<vmem>>, vector<8x128xf32>,
    return
  }
}

</mosaic_0001>

<llo_original>
// kernel: triplets_net5g_head.1
$region0: #{triplets_net5g_head.1}
  #allocation0 [shape = 'u32[]', space=smem, size = 0x4, offset = 0x4, fixed_abs, tag = 'smem constant byte address 0x4 - core index']
  #allocation1 [shape = 'u32[72,128]{1,0:T(1,128)}', space=vmem, size = 0x9000, scoped, tag = 'internal scratch']
  %s0 = inlined_call_operand.hbm [shape: f32[8,512], index: 0, kind: input, shape index: {}]
  %s1 = inlined_call_operand.hbm [shape: f32[512,128], index: 1, kind: input, shape index: {}]
  %s2 = inlined_call_operand.vmem [shape: f32[1,128], index: 2, kind: input, shape index: {}]
  %s3 = inlined_call_operand.hbm [shape: f32[8,128], index: 3, kind: output, shape index: {}]
  %s4 = sld [smem:[#allocation0]]
  $region30: #{triplets_net5g_head.1} parent=0
    _
  %s6 = ssub.s32 1, %s4
  %s7 = scalar_select 0, %s6, %s4
  $region1: #{triplets_net5g_head.1} parent=0
    #allocation2 [shape = 'u8[16384]{0}', space=vmem, size = 0x4000, scoped, tag = 'input window, operand 0, single buffered']
    #allocation3 [shape = 's32[1]{0}', space=sflag, size = 0x4, scoped, tag = 'scoped memory for triplets_net5g_head.1']
    #allocation4 [shape = 's32[1]{0}', space=sflag, size = 0x4, scoped, tag = 'scoped memory for triplets_net5g_head.1']
    #allocation5 [shape = 'u8[262144]{0}', space=vmem, size = 0x40000, scoped, tag = 'input window, operand 1, single buffered']
    #allocation6 [shape = 's32[1]{0}', space=sflag, size = 0x4, scoped, tag = 'scoped memory for triplets_net5g_head.1']
    #allocation7 [shape = 'u8[4096]{0}', space=vmem, size = 0x1000, scoped, tag = 'output window, operand 0, single buffered']
    %8 = vsyncpa [#allocation3], 0
    %9 = vsyncpa [#allocation6], 0
    %10 = vsyncpa [#allocation4], 0
    // Predicated region
    $region2: #{triplets_net5g_head.1} parent=1 // pred_check
      _
    $region3: #{triplets_net5g_head.1} parent=1 // pred_check_branch
      %12 = sbr.rel (0) target = $region5
    $region4: #{triplets_net5g_head.1} parent=1 // pred_region
      %14 = vsyncadd [#allocation3], 0
      %s16 = sshll.u32 %s0, 4
      %s17 = int_to_ptr.hbm [resolvable:$true] %s16
      %s18 = sshll.u32 [#allocation2], 4
      %s19 = int_to_ptr.vmem [resolvable:$true] %s18
      %21 = dma.hbm_to_vmem [thread:$0]  %s17, 512, %s19, [#allocation3]
    $region5: #{triplets_net5g_head.1} parent=1 // pred_fallthru
      _
    // Predicated region
    $region6: #{triplets_net5g_head.1} parent=1 // pred_check
      _
    $region7: #{triplets_net5g_head.1} parent=1 // pred_check_branch
      %23 = sbr.rel (0) target = $region9
    $region8: #{triplets_net5g_head.1} parent=1 // pred_region
      %25 = vsyncadd [#allocation6], 0
      %s26 = sshll.u32 %s1, 4
      %s27 = int_to_ptr.hbm [resolvable:$true] %s26
      %s28 = sshll.u32 [#allocation5], 4
      %s29 = int_to_ptr.vmem [resolvable:$true] %s28
      %34 = dma.hbm_to_vmem [thread:$0]  %s27, 8192, %s29, [#allocation6], 128, 128, 8
    $region9: #{triplets_net5g_head.1} parent=1 // pred_fallthru
      _
    // Predicated region
    $region10: #{triplets_net5g_head.1} parent=1 // pred_check
      _
    $region11: #{triplets_net5g_head.1} parent=1 // pred_check_branch
      %36 = sbr.rel (0) target = $region13
    $region12: #{triplets_net5g_head.1} parent=1 // pred_region
      _
    $region13: #{triplets_net5g_head.1} parent=1 // pred_fallthru
      _
    // Predicated region
    $region14: #{triplets_net5g_head.1} parent=1 // pred_check
      _
    $region15: #{triplets_net5g_head.1} parent=1 // pred_check_branch
      %38 = sbr.rel (0) target = $region17
    $region16: #{triplets_net5g_head.1} parent=1 // pred_region
      %40 = dma.done [#allocation3], 512
    $region17: #{triplets_net5g_head.1} parent=1 // pred_fallthru
      _
    // Predicated region
    $region18: #{triplets_net5g_head.1} parent=1 // pred_check
      _
    $region19: #{triplets_net5g_head.1} parent=1 // pred_check_branch
      %42 = sbr.rel (0) target = $region21
    $region20: #{triplets_net5g_head.1} parent=1 // pred_region
      %44 = dma.done [#allocation6], 8192
    $region21: #{triplets_net5g_head.1} parent=1 // pred_fallthru
      _
    %v45 = vld [vmem:[#allocation2] sm:$0xff]
    %v46 = vld [vmem:[#allocation2 + $0x8] sm:$0xff]
    %v47 = vld [vmem:[#allocation2 + $0x10] sm:$0xff]
    %v48 = vld [vmem:[#allocation2 + $0x18] sm:$0xff]
    %v49 = vld [vmem:[#allocation5] sm:$0xff]
    %v50 = vld [vmem:[#allocation5 + $0x8] sm:$0xff]
    %v51 = vld [vmem:[#allocation5 + $0x10] sm:$0xff]
    %v52 = vld [vmem:[#allocation5 + $0x18] sm:$0xff]
    %v53 = vld [vmem:[#allocation5 + $0x20] sm:$0xff]
    %v54 = vld [vmem:[#allocation5 + $0x28] sm:$0xff]
    %v55 = vld [vmem:[#allocation5 + $0x30] sm:$0xff]
    %v56 = vld [vmem:[#allocation5 + $0x38] sm:$0xff]
    %v57 = vld [vmem:[#allocation5 + $0x40] sm:$0xff]
    %v58 = vld [vmem:[#allocation5 + $0x48] sm:$0xff]
    %v59 = vld [vmem:[#allocation5 + $0x50] sm:$0xff]
    %v60 = vld [vmem:[#allocation5 + $0x58] sm:$0xff]
    %v61 = vld [vmem:[#allocation5 + $0x60] sm:$0xff]
    %v62 = vld [vmem:[#allocation5 + $0x68] sm:$0xff]
    %v63 = vld [vmem:[#allocation5 + $0x70] sm:$0xff]
    %v64 = vld [vmem:[#allocation5 + $0x78] sm:$0xff]
    %v65 = vld [vmem:[#allocation5 + $0x80] sm:$0xff]
    %v66 = vld [vmem:[#allocation5 + $0x88] sm:$0xff]
    %v67 = vld [vmem:[#allocation5 + $0x90] sm:$0xff]
    %v68 = vld [vmem:[#allocation5 + $0x98] sm:$0xff]
    %v69 = vld [vmem:[#allocation5 + $0xa0] sm:$0xff]
    %v70 = vld [vmem:[#allocation5 + $0xa8] sm:$0xff]
    %v71 = vld [vmem:[#allocation5 + $0xb0] sm:$0xff]
    %v72 = vld [vmem:[#allocation5 + $0xb8] sm:$0xff]
    %v73 = vld [vmem:[#allocation5 + $0xc0] sm:$0xff]
    %v74 = vld [vmem:[#allocation5 + $0xc8] sm:$0xff]
    %v75 = vld [vmem:[#allocation5 + $0xd0] sm:$0xff]
    %v76 = vld [vmem:[#allocation5 + $0xd8] sm:$0xff]
    %v77 = vld [vmem:[#allocation5 + $0xe0] sm:$0xff]
    %v78 = vld [vmem:[#allocation5 + $0xe8] sm:$0xff]
    %v79 = vld [vmem:[#allocation5 + $0xf0] sm:$0xff]
    %v80 = vld [vmem:[#allocation5 + $0xf8] sm:$0xff]
    %v81 = vld [vmem:[#allocation5 + $0x100] sm:$0xff]
    %v82 = vld [vmem:[#allocation5 + $0x108] sm:$0xff]
    %v83 = vld [vmem:[#allocation5 + $0x110] sm:$0xff]
    %v84 = vld [vmem:[#allocation5 + $0x118] sm:$0xff]
    %v85 = vld [vmem:[#allocation5 + $0x120] sm:$0xff]
    %v86 = vld [vmem:[#allocation5 + $0x128] sm:$0xff]
    %v87 = vld [vmem:[#allocation5 + $0x130] sm:$0xff]
    %v88 = vld [vmem:[#allocation5 + $0x138] sm:$0xff]
    %v89 = vld [vmem:[#allocation5 + $0x140] sm:$0xff]
    %v90 = vld [vmem:[#allocation5 + $0x148] sm:$0xff]
    %v91 = vld [vmem:[#allocation5 + $0x150] sm:$0xff]
    %v92 = vld [vmem:[#allocation5 + $0x158] sm:$0xff]
    %v93 = vld [vmem:[#allocation5 + $0x160] sm:$0xff]
    %v94 = vld [vmem:[#allocation5 + $0x168] sm:$0xff]
    %v95 = vld [vmem:[#allocation5 + $0x170] sm:$0xff]
    %v96 = vld [vmem:[#allocation5 + $0x178] sm:$0xff]
    %v97 = vld [vmem:[#allocation5 + $0x180] sm:$0xff]
    %v98 = vld [vmem:[#allocation5 + $0x188] sm:$0xff]
    %v99 = vld [vmem:[#allocation5 + $0x190] sm:$0xff]
    %v100 = vld [vmem:[#allocation5 + $0x198] sm:$0xff]
    %v101 = vld [vmem:[#allocation5 + $0x1a0] sm:$0xff]
    %v102 = vld [vmem:[#allocation5 + $0x1a8] sm:$0xff]
    %v103 = vld [vmem:[#allocation5 + $0x1b0] sm:$0xff]
    %v104 = vld [vmem:[#allocation5 + $0x1b8] sm:$0xff]
    %v105 = vld [vmem:[#allocation5 + $0x1c0] sm:$0xff]
    %v106 = vld [vmem:[#allocation5 + $0x1c8] sm:$0xff]
    %v107 = vld [vmem:[#allocation5 + $0x1d0] sm:$0xff]
    %v108 = vld [vmem:[#allocation5 + $0x1d8] sm:$0xff]
    %v109 = vld [vmem:[#allocation5 + $0x1e0] sm:$0xff]
    %v110 = vld [vmem:[#allocation5 + $0x1e8] sm:$0xff]
    %v111 = vld [vmem:[#allocation5 + $0x1f0] sm:$0xff]
    %v112 = vld [vmem:[#allocation5 + $0x1f8] sm:$0xff]
    %v113 = vld [vmem:[%s2] sm:$0x1]
    %v115 = vperm.slane %v113, 0
    %117 = vmatpush.msra.mxu0 %v64
    %118 = vmatpush.msra.mxu0 %v63
    %119 = vmatpush.msra.mxu0 %v62
    %120 = vmatpush.msra.mxu0 %v61
    %121 = vmatpush.msra.mxu0 %v60
    %122 = vmatpush.msra.mxu0 %v59
    %123 = vmatpush.msra.mxu0 %v58
    %124 = vmatpush.msra.mxu0 %v57
    %125 = vmatpush.msra.mxu0 %v56
    %126 = vmatpush.msra.mxu0 %v55
    %127 = vmatpush.msra.mxu0 %v54
    %128 = vmatpush.msra.mxu0 %v53
    %129 = vmatpush.msra.mxu0 %v52
    %130 = vmatpush.msra.mxu0 %v51
    %131 = vmatpush.msra.mxu0 %v50
    %132 = vmatpush.msra.mxu0 %v49
    %133 = vmatmul.f32.gmra.mxu0 %v45
    %v134 = vpop.f32.mrf.mxu0
    %v135 = vadd.f32 %v115, %v134
    %136 = vdwg.mxu0
    %137 = vmatpush.msra.mxu0 %v80
    %138 = vmatpush.msra.mxu0 %v79
    %139 = vmatpush.msra.mxu0 %v78
    %140 = vmatpush.msra.mxu0 %v77
    %141 = vmatpush.msra.mxu0 %v76
    %142 = vmatpush.msra.mxu0 %v75
    %143 = vmatpush.msra.mxu0 %v74
    %144 = vmatpush.msra.mxu0 %v73
    %145 = vmatpush.msra.mxu0 %v72
    %146 = vmatpush.msra.mxu0 %v71
    %147 = vmatpush.msra.mxu0 %v70
    %148 = vmatpush.msra.mxu0 %v69
    %149 = vmatpush.msra.mxu0 %v68
    %150 = vmatpush.msra.mxu0 %v67
    %151 = vmatpush.msra.mxu0 %v66
    %152 = vmatpush.msra.mxu0 %v65
    %153 = vmatmul.f32.gmra.mxu0 %v46
    %v154 = vpop.f32.mrf.mxu0
    %v155 = vadd.f32 %v135, %v154
    %156 = vdwg.mxu0
    %157 = vmatpush.msra.mxu0 %v96
    %158 = vmatpush.msra.mxu0 %v95
    %159 = vmatpush.msra.mxu0 %v94
    %160 = vmatpush.msra.mxu0 %v93
    %161 = vmatpush.msra.mxu0 %v92
    %162 = vmatpush.msra.mxu0 %v91
    %163 = vmatpush.msra.mxu0 %v90
    %164 = vmatpush.msra.mxu0 %v89
    %165 = vmatpush.msra.mxu0 %v88
    %166 = vmatpush.msra.mxu0 %v87
    %167 = vmatpush.msra.mxu0 %v86
    %168 = vmatpush.msra.mxu0 %v85
    %169 = vmatpush.msra.mxu0 %v84
    %170 = vmatpush.msra.mxu0 %v83
    %171 = vmatpush.msra.mxu0 %v82
    %172 = vmatpush.msra.mxu0 %v81
    %173 = vmatmul.f32.gmra.mxu0 %v47
    %v174 = vpop.f32.mrf.mxu0
    %v175 = vadd.f32 %v155, %v174
    %176 = vdwg.mxu0
    %177 = vmatpush.msra.mxu0 %v112
    %178 = vmatpush.msra.mxu0 %v111
    %179 = vmatpush.msra.mxu0 %v110
    %180 = vmatpush.msra.mxu0 %v109
    %181 = vmatpush.msra.mxu0 %v108
    %182 = vmatpush.msra.mxu0 %v107
    %183 = vmatpush.msra.mxu0 %v106
    %184 = vmatpush.msra.mxu0 %v105
    %185 = vmatpush.msra.mxu0 %v104
    %186 = vmatpush.msra.mxu0 %v103
    %187 = vmatpush.msra.mxu0 %v102
    %188 = vmatpush.msra.mxu0 %v101
    %189 = vmatpush.msra.mxu0 %v100
    %190 = vmatpush.msra.mxu0 %v99
    %191 = vmatpush.msra.mxu0 %v98
    %192 = vmatpush.msra.mxu0 %v97
    %193 = vmatmul.f32.gmra.mxu0 %v48
    %v194 = vpop.f32.mrf.mxu0
    %v195 = vadd.f32 %v175, %v194
    %196 = vdwg.mxu0
    %197 = vst [vmem:[#allocation7] sm:$0xff] %v195
    // Predicated region
    $region22: #{triplets_net5g_head.1} parent=1 // pred_check
      _
    $region23: #{triplets_net5g_head.1} parent=1 // pred_check_branch
      %199 = sbr.rel (0) target = $region25
    $region24: #{triplets_net5g_head.1} parent=1 // pred_region
      %201 = vsyncadd [#allocation4], 0
      %s203 = sshll.u32 [#allocation7], 4
      %s204 = int_to_ptr.vmem [resolvable:$true] %s203
      %s205 = sshll.u32 %s3, 4
      %s206 = int_to_ptr.hbm [resolvable:$true] %s205
      %208 = dma.vmem_to_hbm [thread:$0]  %s204, 128, %s206, [#allocation4]
    $region25: #{triplets_net5g_head.1} parent=1 // pred_fallthru
      _
    // Predicated region
    $region26: #{triplets_net5g_head.1} parent=1 // pred_check
      _
    $region27: #{triplets_net5g_head.1} parent=1 // pred_check_branch
      %210 = sbr.rel (0) target = $region29
    $region28: #{triplets_net5g_head.1} parent=1 // pred_region
      %212 = dma.done [#allocation4], 128
    $region29: #{triplets_net5g_head.1} parent=1 // pred_fallthru
      _
    %213 = vsyncpa [#allocation3], 1
    %214 = vsyncpa [#allocation6], 1
    %215 = vsyncpa [#allocation4], 1

</llo_original>
